<compile_context>
chip_gen: v6e
topology: v6e:2x2x1
jax: 0.10.0
libtpu: 0.0.40
codegen_flags: <defaults>
</compile_context>

<pallas_src>
import jax
import jax.numpy as jnp
from jax.experimental import pallas as pl
from jax.experimental.pallas import tpu as pltpu

_LANE = 128
_MIN_STEPS = 8                       # keep pipelining / 2-TC sharding alive
_SMALL_ARRAY_BYTES = 2 * 1024 * 1024 # below this, a single grid step is fine


def _identity_kernel(x_ref, o_ref):
    # Pure VMEM copy of the current tile.
    o_ref[...] = x_ref[...]


def _chip_budgets():
    """(tile_bytes, vmem_limit_bytes) chosen from the chip's VMEM capacity."""
    try:
        vmem_cap = int(getattr(pltpu.get_tpu_info(), "vmem_capacity_bytes", 0))
    except Exception:
        vmem_cap = 0
    if vmem_cap and vmem_cap <= 64 * 1024 * 1024:
        # v7x-class: 64 MiB VMEM per TensorCore -> smaller tiles, more headroom.
        return 4 * 1024 * 1024, 40 * 1024 * 1024
    if vmem_cap >= 128 * 1024 * 1024:
        # v5e / v6e: 128 MiB VMEM -> 8 MiB tiles are past the roofline plateau.
        return 8 * 1024 * 1024, 64 * 1024 * 1024
    # Unknown chip: conservative (v7x-safe) defaults.
    return 4 * 1024 * 1024, 40 * 1024 * 1024


def _lane_dense_2d(x: jax.Array):
    """Reshape to a lane-dense (rows, W) view when possible (free layout plumbing)."""
    size = x.size
    for w in (8192, 4096, 2048, 1024, 512, 256, 128):
        if size % w == 0:
            return x.reshape(size // w, w)
    # No multiple of 128 divides the element count: fall back to logical last dim.
    if x.ndim == 0:
        return x.reshape(1, 1)
    if x.ndim == 1:
        return x.reshape(1, -1)
    return x.reshape(-1, x.shape[-1])


def identity_map(x: jax.Array, *args, **kwargs) -> jax.Array:
    """Equivalent of IdentityMap.forward: returns x unchanged.

    The fastest identity is no kernel at all (zero HBM traffic).  Use
    identity_map_pallas() only if an explicit Pallas op is required.
    """
    del args, kwargs
    return x


def identity_map_pallas(x: jax.Array, *args, donate: bool = False, **kwargs) -> jax.Array:
    """Explicit Pallas identity copy (streaming HBM->VMEM->HBM).

    Set donate=True only when the caller donates x (jit donate_argnums); then
    the output aliases the input buffer and no second HBM allocation is made.
    """
    del args, kwargs
    orig_shape = x.shape

    # Degenerate inputs: nothing to copy.
    if x.size == 0:
        return x

    x2 = _lane_dense_2d(x)
    M, N = x2.shape
    itemsize = jnp.dtype(x2.dtype).itemsize

    tile_bytes, vmem_limit_bytes = _chip_budgets()

    # Padded VMEM accounting: last dim lane-pads to a multiple of 128.
    n_pad = ((N + _LANE - 1) // _LANE) * _LANE
    row_bytes = max(1, n_pad * itemsize)

    # Sublane multiple for this dtype (f32: 8, bf16: 16, int8/fp8: 32).
    sub = max(8, 32 // max(1, itemsize))

    # tm from the per-tile VMEM budget (padded bytes), rounded down to `sub`.
    tm_budget = max(sub, (tile_bytes // row_bytes) // sub * sub)

    total_padded_bytes = M * row_bytes
    if total_padded_bytes > _SMALL_ARRAY_BYTES:
        # Never collapse to a single grid step: cap tm so we get >= _MIN_STEPS
        # steps (restores double-buffering and v7x 2-TC sharding).
        tm_cap = max(sub, (pl.cdiv(M, _MIN_STEPS) // sub) * sub)
        tm = min(tm_budget, tm_cap, M)
        if tm % sub != 0:   # only possible if tm == M and M small; keep valid
            tm = M
    else:
        tm = min(M, tm_budget)

    # Block's second-to-last dim must be a multiple of 8 or equal the full dim.
    if tm != M and tm % sub != 0:
        tm = max(sub, (tm // sub) * sub)
        tm = min(tm, M)
        if tm % sub != 0:
            tm = M

    grid = (pl.cdiv(M, tm),)

    out2 = pl.pallas_call(
        _identity_kernel,
        out_shape=jax.ShapeDtypeStruct((M, N), x2.dtype),
        grid=grid,
        in_specs=[pl.BlockSpec((tm, N), lambda i: (i, 0))],
        out_specs=pl.BlockSpec((tm, N), lambda i: (i, 0)),
        # Alias only when the caller donates x; otherwise XLA would insert a
        # hidden defensive copy of the input to satisfy the alias.
        input_output_aliases=({0: 0} if donate else {}),
        cost_estimate=pl.CostEstimate(
            flops=0,
            transcendentals=0,
            bytes_accessed=2 * x.size * itemsize,
        ),
        compiler_params=pltpu.CompilerParams(
            # "parallel" lets v7x shard the row axis across its 2 TensorCores;
            # measured no-op on single-TC v5e/v6e.
            dimension_semantics=("parallel",),
            vmem_limit_bytes=vmem_limit_bytes,
        ),
    )(x2)

    return out2.reshape(orig_shape)


def identity_map_config():
    # Equivalent of the IdentityMap.config property.
    return {"mm_projector_type": "identity"}


if __name__ == "__main__":
    key = jax.random.PRNGKey(0)

    # Small projector-style input: batch=2, seq=8, hidden=32.
    x = jax.random.normal(key, (2, 8, 32), dtype=jnp.float32)
    expected = jax.device_get(x)

    # Module-equivalent fast path: forward(x, *args, **kwargs) is just x.
    y_fast = identity_map(x, "unused_positional", unused_kwarg=123)
    assert y_fast is x

    # Explicit Pallas kernel path (lane-dense reshape branch: 512 elems -> (1, 512)).
    y = jax.block_until_ready(identity_map_pallas(x))
    assert y.shape == x.shape and y.dtype == x.dtype
    assert bool((jax.device_get(y) == expected).all())

    # Fallback branch (no multiple of 128 divides the element count) + bf16.
    x_odd = jax.random.normal(jax.random.PRNGKey(1), (3, 5, 7), dtype=jnp.bfloat16)
    expected_odd = jax.device_get(x_odd)
    y_odd = jax.block_until_ready(identity_map_pallas(x_odd))
    assert y_odd.shape == x_odd.shape and y_odd.dtype == x_odd.dtype
    assert bool((jax.device_get(y_odd) == expected_odd).all())

    assert identity_map_config() == {"mm_projector_type": "identity"}
    print("KERNEL_OK")
</pallas_src>

<mosaic_0001>
module attributes {stable_mosaic.version = 11 : i64} {
  func.func @_identity_kernel(%arg0: i32, %arg1: memref<1x512xf32, #tpu.memory_space<vmem>>, %arg2: memref<1x512xf32, #tpu.memory_space<vmem>>) attributes {dimension_semantics = [#tpu.dimension_semantics<parallel>], iteration_bounds = array<i64: 1>, scalar_prefetch = 0 : i64, scratch_operands = 0 : i64, tpu.core_type = #tpu.core_type<tc>, window_params = [{transform_indices = @transform_0, window_bounds = array<i64: 1, 512>}, {transform_indices = @transform_1, window_bounds = array<i64: 1, 512>}]} {
    %c0 = arith.constant 0 : index
    %c0_0 = arith.constant 0 : index
    %0 = vector.load %arg1[%c0, %c0_0] : memref<1x512xf32, #tpu.memory_space<vmem>>, vector<1x512xf32>
    %c0_1 = arith.constant 0 : index
    %c0_2 = arith.constant 0 : index
    %1 = vector.load %arg2[%c0_1, %c0_2] : memref<1x512xf32, #tpu.memory_space<vmem>>, vector<1x512xf32>
    tpu.vector_store %arg2[%c0_1, %c0_2], %0 {strides = array<i32>} : memref<1x512xf32, #tpu.memory_space<vmem>>, vector<1x512xf32>,
    return
  }
  func.func @transform_0(%arg0: i32) -> (i32, i32) {
    %c0_i32 = arith.constant 0 : i32
    %c0_i32_0 = arith.constant 0 : i32
    return %arg0, %c0_i32 : i32, i32
  }
  func.func @transform_1(%arg0: i32) -> (i32, i32) {
    %c0_i32 = arith.constant 0 : i32
    %c0_i32_0 = arith.constant 0 : i32
    return %arg0, %c0_i32 : i32, i32
  }
}

</mosaic_0001>

<llo_original>
// kernel: tpu_custom_call.1
$region0: #{tpu_custom_call.1}
  #allocation0 [shape = 'u32[]', space=smem, size = 0x4, offset = 0x4, fixed_abs, tag = 'smem constant byte address 0x4 - core index']
  #allocation1 [shape = 'u32[144,128]{1,0:T(1,128)}', space=vmem, size = 0x12000, scoped, tag = 'internal scratch']
  %s0 = inlined_call_operand.hbm [shape: f32[1,512], index: 0, kind: input, shape index: {}]
  %s1 = inlined_call_operand.hbm [shape: f32[1,512], index: 1, kind: output, shape index: {}]
  %s2 = sld [smem:[#allocation0]]
  $region18: #{tpu_custom_call.1} parent=0
    _
  %s4 = ssub.s32 1, %s2
  %s5 = scalar_select 0, %s4, %s2
  $region1: #{tpu_custom_call.1} parent=0
    #allocation2 [shape = 'u8[2048]{0}', space=vmem, size = 0x800, scoped, tag = 'input window, operand 0, single buffered']
    #allocation3 [shape = 's32[1]{0}', space=sflag, size = 0x4, scoped, tag = 'scoped memory for tpu_custom_call.1']
    #allocation4 [shape = 's32[1]{0}', space=sflag, size = 0x4, scoped, tag = 'scoped memory for tpu_custom_call.1']
    #allocation5 [shape = 'u8[2048]{0}', space=vmem, size = 0x800, scoped, tag = 'output window, operand 0, single buffered']
    %6 = vsyncpa [#allocation3], 0
    %7 = vsyncpa [#allocation4], 0
    // Predicated region
    $region2: #{tpu_custom_call.1} parent=1 // pred_check
      _
    $region3: #{tpu_custom_call.1} parent=1 // pred_check_branch
      %9 = sbr.rel (0) target = $region5
    $region4: #{tpu_custom_call.1} parent=1 // pred_region
      %s11 = ssub.s32 64, 64
      %12 = vsyncadd [#allocation3], %s11
      %s14 = sshll.u32 [#allocation2], 4
      %s15 = int_to_ptr.vmem [resolvable:$true] %s14
      %17 = dma.hbm_to_vmem [thread:$0]  %s0, 64, %s15, [#allocation3]
    $region5: #{tpu_custom_call.1} parent=1 // pred_fallthru
      _
    // Predicated region
    $region6: #{tpu_custom_call.1} parent=1 // pred_check
      _
    $region7: #{tpu_custom_call.1} parent=1 // pred_check_branch
      %19 = sbr.rel (0) target = $region9
    $region8: #{tpu_custom_call.1} parent=1 // pred_region
      %20 = dma.done [#allocation3], 64
    $region9: #{tpu_custom_call.1} parent=1 // pred_fallthru
      _
    %v21 = vld [vmem:[#allocation2] sm:$0xf]
    %v22 = vlaneseq
    %vm23 = vcmp.ge.s32.totalorder %v22, 0
    %vm24 = vcmp.lt.s32.totalorder %v22, 512
    %vm25 = vmand %vm23, %vm24
    %26 = vst.msk [vmem:[#allocation5] sm:$0xf] %vm25, %v21
    // Predicated region
    $region10: #{tpu_custom_call.1} parent=1 // pred_check
      _
    $region11: #{tpu_custom_call.1} parent=1 // pred_check_branch
      %28 = sbr.rel (0) target = $region13
    $region12: #{tpu_custom_call.1} parent=1 // pred_region
      %s30 = ssub.s32 64, 64
      %31 = vsyncadd [#allocation4], %s30
      %s33 = sshll.u32 [#allocation5], 4
      %s34 = int_to_ptr.vmem [resolvable:$true] %s33
      %36 = dma.vmem_to_hbm [thread:$0]  %s34, 64, %s1, [#allocation4]
    $region13: #{tpu_custom_call.1} parent=1 // pred_fallthru
      _
    // Predicated region
    $region14: #{tpu_custom_call.1} parent=1 // pred_check
      _
    $region15: #{tpu_custom_call.1} parent=1 // pred_check_branch
      %38 = sbr.rel (0) target = $region17
    $region16: #{tpu_custom_call.1} parent=1 // pred_region
      %39 = dma.done [#allocation4], 64
    $region17: #{tpu_custom_call.1} parent=1 // pred_fallthru
      _
    %40 = vsyncpa [#allocation3], 1
    %41 = vsyncpa [#allocation4], 1

</llo_original>
